<compile_context>
chip_gen: v7x
topology: tpu7x:2x2x1
jax: 0.10.0
libtpu: 0.0.40
codegen_flags: <defaults>
</compile_context>

<pallas_src>
import functools

import jax
import jax.numpy as jnp
from jax.experimental import pallas as pl
from jax.experimental.pallas import tpu as pltpu


def _make_divisible(ch, divisor=8, min_ch=None):
    if min_ch is None:
        min_ch = divisor
    new_ch = max(min_ch, int(ch + divisor / 2) // divisor * divisor)
    if new_ch < 0.9 * ch:
        new_ch += divisor
    return new_ch


def _vmem_limit(need_bytes):
    # Floor at 16 MiB (v5e default), cap at 48 MiB (leaves headroom on v7x's 64 MiB).
    return int(min(max(need_bytes, 16 << 20), 48 << 20))


# ---------------------------------------------------------------------------
# Fused path: one grid step per sample; read x once, pool, excite, multiply.
#   x_ref: (C, HW)   w1: (Cs, C)  b1: (Cs, 1)  w2: (C, Cs)  b2: (C, 1)
# ---------------------------------------------------------------------------
def _fused_se_kernel(x_ref, w1_ref, b1_ref, w2_ref, b2_ref, o_ref, *, inv_hw):
    x = x_ref[...]                                                 # (C, HW) native dtype
    # adaptive_avg_pool2d: f32 accumulation regardless of input dtype.
    pooled = jnp.sum(x.astype(jnp.float32), axis=-1, keepdims=True) * inv_hw  # (C, 1)
    # fc1 (1x1 conv) + ReLU, column form: (Cs, C) @ (C, 1)
    h = jnp.dot(w1_ref[...], pooled, preferred_element_type=jnp.float32)
    h = jnp.maximum(h + b1_ref[...].astype(jnp.float32), 0.0)                 # (Cs, 1)
    # fc2 (1x1 conv) + hardsigmoid
    s = jnp.dot(w2_ref[...], h, preferred_element_type=jnp.float32)
    s = s + b2_ref[...].astype(jnp.float32)
    s = jnp.clip(s / 6.0 + 0.5, 0.0, 1.0)                                     # (C, 1)
    # Broadcast multiply along the lane (HW) axis, in the input dtype
    # (bf16-native on v6e/v7x when x is bf16).
    o_ref[...] = (x * s.astype(x.dtype)).astype(o_ref.dtype)


# ---------------------------------------------------------------------------
# Fallback phase A: tiled pooling (HW tiles, masked remainder) + excite.
# ---------------------------------------------------------------------------
def _pool_excite_kernel(x_ref, w1_ref, b1_ref, w2_ref, b2_ref, scale_ref, acc_ref,
                        *, inv_hw, hw, hw_tile):
    t = pl.program_id(1)

    @pl.when(t == 0)
    def _():
        acc_ref[...] = jnp.zeros_like(acc_ref)

    x = x_ref[...].astype(jnp.float32)                             # (C, hw_tile)
    if hw % hw_tile:                                               # mask OOB lanes of last tile
        lane = jax.lax.broadcasted_iota(jnp.int32, x.shape, 1) + t * hw_tile
        x = jnp.where(lane < hw, x, 0.0)
    acc_ref[...] += jnp.sum(x, axis=-1, keepdims=True)             # (C, 1) f32 partial sum

    @pl.when(t == pl.num_programs(1) - 1)
    def _():
        pooled = acc_ref[...] * inv_hw                             # (C, 1)
        h = jnp.dot(w1_ref[...], pooled, preferred_element_type=jnp.float32)
        h = jnp.maximum(h + b1_ref[...].astype(jnp.float32), 0.0)
        s = jnp.dot(w2_ref[...], h, preferred_element_type=jnp.float32)
        s = s + b2_ref[...].astype(jnp.float32)
        scale_ref[...] = jnp.clip(s / 6.0 + 0.5, 0.0, 1.0)         # (C, 1)


# ---------------------------------------------------------------------------
# Fallback phase B: streaming out = scale * x over lane-dense (C, hw_tile) blocks.
# ---------------------------------------------------------------------------
def _scale_mul_kernel(scale_ref, x_ref, o_ref):
    x = x_ref[...]                                                 # (C, hw_tile)
    o_ref[...] = (x * scale_ref[...].astype(x.dtype)).astype(o_ref.dtype)


def squeeze_excitation(x, w1, b1, w2, b2, *, max_block_bytes=8 << 20,
                       donate_input=False):
    """MobileNetV3 SqueezeExcitation forward.

    x:  (N, C, H, W)
    w1: (Cs, C)  (fc1.weight, 1x1 conv squeezed)   b1: (Cs,)
    w2: (C, Cs)  (fc2.weight, 1x1 conv squeezed)   b2: (C,)
    """
    N, C, H, W = x.shape
    Cs = w1.shape[0]
    HW = H * W
    isz = x.dtype.itemsize

    xr = x.reshape(N, C, HW)                     # free view; HW lands on the lane axis
    b1c = b1.reshape(Cs, 1)
    b2c = b2.reshape(C, 1)
    w_bytes = (w1.size * w1.dtype.itemsize + w2.size * w2.dtype.itemsize
               + (Cs + C) * b1.dtype.itemsize)

    slab_bytes = 2 * C * HW * isz                # per-sample in + out block (single-buffered)

    if slab_bytes <= max_block_bytes:
        # ------------------------- fused single-pass path -------------------------
        need = 2 * slab_bytes + 2 * w_bytes + (1 << 20)      # double-buffered blocks + slack
        cost = pl.CostEstimate(
            flops=int(N * (2 * C * HW + 4 * C * Cs)),
            transcendentals=0,
            bytes_accessed=int(2 * N * C * HW * isz + w_bytes))
        out = pl.pallas_call(
            functools.partial(_fused_se_kernel, inv_hw=1.0 / HW),
            out_shape=jax.ShapeDtypeStruct((N, C, HW), x.dtype),
            grid=(N,),
            in_specs=[
                pl.BlockSpec((None, C, HW), lambda n: (n, 0, 0)),   # x sample slab
                pl.BlockSpec((Cs, C), lambda n: (0, 0)),            # fc1 weight
                pl.BlockSpec((Cs, 1), lambda n: (0, 0)),            # fc1 bias
                pl.BlockSpec((C, Cs), lambda n: (0, 0)),            # fc2 weight
                pl.BlockSpec((C, 1), lambda n: (0, 0)),             # fc2 bias
            ],
            out_specs=pl.BlockSpec((None, C, HW), lambda n: (n, 0, 0)),
            compiler_params=pltpu.CompilerParams(
                dimension_semantics=("parallel",),                  # batch across TCs
                vmem_limit_bytes=_vmem_limit(need)),
            cost_estimate=cost,
            input_output_aliases=({0: 0} if donate_input else {}),
        )(xr, w1, b1c, w2, b2c)
        return out.reshape(N, C, H, W)

    # -------------------- tiled two-phase fallback (huge C*HW) --------------------
    hw_cap = max_block_bytes // (2 * C * isz)
    hw_tile = max(128, (hw_cap // 128) * 128)
    if hw_tile >= HW:
        hw_tile = HW
    n_hw = pl.cdiv(HW, hw_tile)

    # Phase A: pooled mean + the two tiny FCs -> per-(N, C) scale (column form).
    need_a = 2 * C * hw_tile * isz + 2 * w_bytes + 16 * C * 4 + (1 << 20)
    cost_a = pl.CostEstimate(
        flops=int(N * (C * HW + 4 * C * Cs)),
        transcendentals=0,
        bytes_accessed=int(N * C * HW * isz + w_bytes + N * C * 4))
    scale = pl.pallas_call(
        functools.partial(_pool_excite_kernel, inv_hw=1.0 / HW, hw=HW, hw_tile=hw_tile),
        out_shape=jax.ShapeDtypeStruct((N, C, 1), jnp.float32),
        grid=(N, n_hw),
        in_specs=[
            pl.BlockSpec((None, C, hw_tile), lambda n, t: (n, 0, t)),
            pl.BlockSpec((Cs, C), lambda n, t: (0, 0)),
            pl.BlockSpec((Cs, 1), lambda n, t: (0, 0)),
            pl.BlockSpec((C, Cs), lambda n, t: (0, 0)),
            pl.BlockSpec((C, 1), lambda n, t: (0, 0)),
        ],
        out_specs=pl.BlockSpec((None, C, 1), lambda n, t: (n, 0, 0)),
        scratch_shapes=[pltpu.VMEM((C, 1), jnp.float32)],
        compiler_params=pltpu.CompilerParams(
            dimension_semantics=("parallel", "arbitrary"),
            vmem_limit_bytes=_vmem_limit(need_a)),
        cost_estimate=cost_a,
    )(xr, w1, b1c, w2, b2c)

    # Phase B: out = scale * x, streamed lane-dense blocks, both axes parallel.
    need_b = 2 * (2 * C * hw_tile * isz + C * 4) + (1 << 20)
    cost_b = pl.CostEstimate(
        flops=int(N * C * HW),
        transcendentals=0,
        bytes_accessed=int(2 * N * C * HW * isz + N * C * 4))
    out = pl.pallas_call(
        _scale_mul_kernel,
        out_shape=jax.ShapeDtypeStruct((N, C, HW), x.dtype),
        grid=(N, n_hw),
        in_specs=[
            pl.BlockSpec((None, C, 1), lambda n, t: (n, 0, 0)),
            pl.BlockSpec((None, C, hw_tile), lambda n, t: (n, 0, t)),
        ],
        out_specs=pl.BlockSpec((None, C, hw_tile), lambda n, t: (n, 0, t)),
        compiler_params=pltpu.CompilerParams(
            dimension_semantics=("parallel", "parallel"),
            vmem_limit_bytes=_vmem_limit(need_b)),
        cost_estimate=cost_b,
        input_output_aliases=({1: 0} if donate_input else {}),
    )(scale, xr)
    return out.reshape(N, C, H, W)


def reference_se(x, w1, b1, w2, b2):
    # Pure-JAX reference matching the PyTorch forward (Conv2d 1x1 == matmul).
    pooled = jnp.mean(x, axis=(2, 3))                 # (N, C)
    s = jnp.maximum(pooled @ w1.T + b1, 0.0)          # relu(fc1)
    s = s @ w2.T + b2                                 # fc2
    s = jnp.clip(s / 6.0 + 0.5, 0.0, 1.0)             # hardsigmoid
    return x * s[:, :, None, None]


if __name__ == "__main__":
    # SMALL shapes consistent with the module.
    N, C, H, W = 2, 16, 16, 16
    Cs = _make_divisible(C // 4, 8)                   # squeeze channels (= 8 for C=16)

    key = jax.random.PRNGKey(0)
    kx, k1, k2, k3, k4 = jax.random.split(key, 5)
    x = jax.random.normal(kx, (N, C, H, W), dtype=jnp.float32)

    # PyTorch Conv2d-1x1 weight layout: (out_ch, in_ch); biases (out_ch,).
    w1 = jax.random.normal(k1, (Cs, C), dtype=jnp.float32) * 0.1
    b1 = jax.random.normal(k2, (Cs,), dtype=jnp.float32) * 0.1
    w2 = jax.random.normal(k3, (C, Cs), dtype=jnp.float32) * 0.1
    b2 = jax.random.normal(k4, (C,), dtype=jnp.float32) * 0.1

    ref = reference_se(x, w1, b1, w2, b2)
    tol = dict(atol=1e-4, rtol=1e-4)                  # margin for MXU matmul precision

    # 1) Fused single-pass path (default for all MobileNetV3 SE shapes).
    out = jax.block_until_ready(squeeze_excitation(x, w1, b1, w2, b2))
    assert out.shape == (N, C, H, W), out.shape
    assert jnp.allclose(out, ref, **tol), "fused path mismatch vs reference"

    # 2) Fused path with H*W not a multiple of 128 (the common real SE case).
    x2 = jax.random.normal(kx, (N, C, 14, 14), dtype=jnp.float32)
    out2 = jax.block_until_ready(squeeze_excitation(x2, w1, b1, w2, b2))
    assert jnp.allclose(out2, reference_se(x2, w1, b1, w2, b2), **tol), \
        "fused path (HW=196) mismatch vs reference"

    # 3) Force the tiled two-phase fallback (exercises the HW-tiled reduction).
    out3 = jax.block_until_ready(
        squeeze_excitation(x, w1, b1, w2, b2, max_block_bytes=16 * 1024))
    assert jnp.allclose(out3, ref, **tol), "fallback path mismatch vs reference"

    print("KERNEL_OK")
</pallas_src>

<mosaic_0001>
module attributes {stable_mosaic.version = 11 : i64} {
  func.func @_fused_se_kernel(%arg0: i32, %arg1: memref<1x16x256xf32, #tpu.memory_space<vmem>>, %arg2: memref<8x16xf32, #tpu.memory_space<vmem>>, %arg3: memref<8x1xf32, #tpu.memory_space<vmem>>, %arg4: memref<16x8xf32, #tpu.memory_space<vmem>>, %arg5: memref<16x1xf32, #tpu.memory_space<vmem>>, %arg6: memref<1x16x256xf32, #tpu.memory_space<vmem>>) attributes {dimension_semantics = [#tpu.dimension_semantics<parallel>], iteration_bounds = array<i64: 2>, scalar_prefetch = 0 : i64, scratch_operands = 0 : i64, tpu.core_type = #tpu.core_type<tc>, window_params = [{transform_indices = @transform_0, window_bounds = array<i64: 1, 16, 256>}, {pipeline_mode = #tpu.pipeline_mode<synchronous>, transform_indices = @transform_1, window_bounds = array<i64: 8, 16>}, {pipeline_mode = #tpu.pipeline_mode<synchronous>, transform_indices = @transform_2, window_bounds = array<i64: 8, 1>}, {pipeline_mode = #tpu.pipeline_mode<synchronous>, transform_indices = @transform_3, window_bounds = array<i64: 16, 8>}, {pipeline_mode = #tpu.pipeline_mode<synchronous>, transform_indices = @transform_4, window_bounds = array<i64: 16, 1>}, {transform_indices = @transform_5, window_bounds = array<i64: 1, 16, 256>}]} {
    %c0 = arith.constant 0 : index
    %c0_0 = arith.constant 0 : index
    %c0_1 = arith.constant 0 : index
    %0 = vector.load %arg1[%c0, %c0_0, %c0_1] : memref<1x16x256xf32, #tpu.memory_space<vmem>>, vector<1x16x256xf32>
    %1 = vector.shape_cast %0 : vector<1x16x256xf32> to vector<16x256xf32>
    %cst = arith.constant dense<0.000000e+00> : vector<16xf32>
    %2 = vector.multi_reduction <add>, %1, %cst [1] : vector<16x256xf32> to vector<16xf32>
    %3 = vector.shape_cast %2 : vector<16xf32> to vector<16x1xf32>
    %cst_2 = arith.constant 3.906250e-03 : f32
    %4 = vector.broadcast %cst_2 : f32 to vector<16x1xf32>
    %5 = arith.mulf %3, %4 : vector<16x1xf32>
    %c0_3 = arith.constant 0 : index
    %c0_4 = arith.constant 0 : index
    %6 = vector.load %arg2[%c0_3, %c0_4] : memref<8x16xf32, #tpu.memory_space<vmem>>, vector<8x16xf32>
    %cst_5 = arith.constant dense<0.000000e+00> : vector<8x1xf32>
    %7 = tpu.matmul %6, %5, %cst_5 {dimension_numbers = #tpu.dot_dimension_numbers<[1], [0], [0], [1], [0, 0, 1, 1], [], []>} : vector<8x16xf32>, vector<16x1xf32>, vector<8x1xf32> -> vector<8x1xf32>
    %c0_6 = arith.constant 0 : index
    %c0_7 = arith.constant 0 : index
    %8 = vector.load %arg3[%c0_6, %c0_7] : memref<8x1xf32, #tpu.memory_space<vmem>>, vector<8x1xf32>
    %9 = arith.addf %7, %8 : vector<8x1xf32>
    %cst_8 = arith.constant 0.000000e+00 : f32
    %10 = vector.broadcast %cst_8 : f32 to vector<8x1xf32>
    %11 = arith.maximumf %9, %10 : vector<8x1xf32>
    %c0_9 = arith.constant 0 : index
    %c0_10 = arith.constant 0 : index
    %12 = vector.load %arg4[%c0_9, %c0_10] : memref<16x8xf32, #tpu.memory_space<vmem>>, vector<16x8xf32>
    %cst_11 = arith.constant dense<0.000000e+00> : vector<16x1xf32>
    %13 = tpu.matmul %12, %11, %cst_11 {dimension_numbers = #tpu.dot_dimension_numbers<[1], [0], [0], [1], [0, 0, 1, 1], [], []>} : vector<16x8xf32>, vector<8x1xf32>, vector<16x1xf32> -> vector<16x1xf32>
    %c0_12 = arith.constant 0 : index
    %c0_13 = arith.constant 0 : index
    %14 = vector.load %arg5[%c0_12, %c0_13] : memref<16x1xf32, #tpu.memory_space<vmem>>, vector<16x1xf32>
    %15 = arith.addf %13, %14 : vector<16x1xf32>
    %cst_14 = arith.constant 6.000000e+00 : f32
    %16 = vector.broadcast %cst_14 : f32 to vector<16x1xf32>
    %17 = arith.divf %15, %16 : vector<16x1xf32>
    %cst_15 = arith.constant 5.000000e-01 : f32
    %18 = vector.broadcast %cst_15 : f32 to vector<16x1xf32>
    %19 = arith.addf %17, %18 : vector<16x1xf32>
    %cst_16 = arith.constant 0.000000e+00 : f32
    %cst_17 = arith.constant 1.000000e+00 : f32
    %20 = vector.broadcast %cst_16 : f32 to vector<16x1xf32>
    %21 = arith.maximumf %20, %19 : vector<16x1xf32>
    %22 = vector.broadcast %cst_17 : f32 to vector<16x1xf32>
    %23 = arith.minimumf %22, %21 : vector<16x1xf32>
    %24 = vector.broadcast %23 : vector<16x1xf32> to vector<16x256xf32>
    %25 = arith.mulf %1, %24 : vector<16x256xf32>
    %c0_18 = arith.constant 0 : index
    %c0_19 = arith.constant 0 : index
    %c0_20 = arith.constant 0 : index
    %26 = vector.load %arg6[%c0_18, %c0_19, %c0_20] : memref<1x16x256xf32, #tpu.memory_space<vmem>>, vector<1x16x256xf32>
    %27 = vector.shape_cast %26 : vector<1x16x256xf32> to vector<16x256xf32>
    %28 = vector.shape_cast %25 : vector<16x256xf32> to vector<1x16x256xf32>
    tpu.vector_store %arg6[%c0_18, %c0_19, %c0_20], %28 {strides = array<i32>} : memref<1x16x256xf32, #tpu.memory_space<vmem>>, vector<1x16x256xf32>,
    return
  }
  func.func @transform_0(%arg0: i32) -> (i32, i32, i32) {
    %c0_i32 = arith.constant 0 : i32
    %c0_i32_0 = arith.constant 0 : i32
    %c0_i32_1 = arith.constant 0 : i32
    return %arg0, %c0_i32, %c0_i32_0 : i32, i32, i32
  }
  func.func @transform_1(%arg0: i32) -> (i32, i32) {
    %c0_i32 = arith.constant 0 : i32
    %c0_i32_0 = arith.constant 0 : i32
    %c0_i32_1 = arith.constant 0 : i32
    return %c0_i32, %c0_i32_0 : i32, i32
  }
  func.func @transform_2(%arg0: i32) -> (i32, i32) {
    %c0_i32 = arith.constant 0 : i32
    %c0_i32_0 = arith.constant 0 : i32
    %c0_i32_1 = arith.constant 0 : i32
    return %c0_i32, %c0_i32_0 : i32, i32
  }
  func.func @transform_3(%arg0: i32) -> (i32, i32) {
    %c0_i32 = arith.constant 0 : i32
    %c0_i32_0 = arith.constant 0 : i32
    %c0_i32_1 = arith.constant 0 : i32
    return %c0_i32, %c0_i32_0 : i32, i32
  }
  func.func @transform_4(%arg0: i32) -> (i32, i32) {
    %c0_i32 = arith.constant 0 : i32
    %c0_i32_0 = arith.constant 0 : i32
    %c0_i32_1 = arith.constant 0 : i32
    return %c0_i32, %c0_i32_0 : i32, i32
  }
  func.func @transform_5(%arg0: i32) -> (i32, i32, i32) {
    %c0_i32 = arith.constant 0 : i32
    %c0_i32_0 = arith.constant 0 : i32
    %c0_i32_1 = arith.constant 0 : i32
    return %arg0, %c0_i32, %c0_i32_0 : i32, i32, i32
  }
}

</mosaic_0001>

<llo_original>
// kernel: tpu_custom_call.1
$region0: #{tpu_custom_call.1}
  #allocation0 [shape = 'u32[]', space=smem, size = 0x4, offset = 0x4, fixed_abs, tag = 'smem constant byte address 0x4 - core index']
  #allocation1 [shape = 'u32[144,128]{1,0:T(1,128)}', space=vmem, size = 0x12000, scoped, tag = 'internal scratch']
  %s0 = inlined_call_operand.hbm [shape: f32[2,16,256], index: 0, kind: input, shape index: {}]
  %s1 = inlined_call_operand.vmem [shape: f32[8,16], index: 1, kind: input, shape index: {}]
  %s2 = inlined_call_operand.vmem [shape: f32[8,1], index: 2, kind: input, shape index: {}]
  %s3 = inlined_call_operand.vmem [shape: f32[16,8], index: 3, kind: input, shape index: {}]
  %s4 = inlined_call_operand.vmem [shape: f32[16,1], index: 4, kind: input, shape index: {}]
  %s5 = inlined_call_operand.hbm [shape: f32[2,16,256], index: 5, kind: output, shape index: {}]
  %s6 = sld [smem:[#allocation0]]
  $region57: #{tpu_custom_call.1} parent=0
    _
  %s8 = ssub.s32 1, %s6
  %s9 = scalar_select 0, %s8, %s6
  $region1: #{tpu_custom_call.1} parent=0
    #allocation2 [shape = 'u8[32768]{0}', space=vmem, size = 0x8000, scoped, tag = 'input window, operand 0']
    #allocation3 [shape = 's32[2]{0}', space=sflag, size = 0x8, scoped, tag = 'scoped memory for tpu_custom_call.1']
    #allocation4 [shape = 's32[2]{0}', space=sflag, size = 0x8, scoped, tag = 'scoped memory for tpu_custom_call.1']
    #allocation5 [shape = 'u8[32768]{0}', space=vmem, size = 0x8000, scoped, tag = 'output window, operand 0']
    %10 = vsyncpa [#allocation3], 0
    %s11 = scalar_lea.sflag [#allocation3], 1
    %12 = vsyncpa %s11, 0
    %13 = vsyncpa [#allocation4], 0
    %s14 = scalar_lea.sflag [#allocation4], 1
    %15 = vsyncpa %s14, 0
    loop: start=0, step=1, limit=4
    $region2: #{tpu_custom_call.1} parent=1 // loop_pre_header
      _
    $region3: #{tpu_custom_call.1} parent=1 // loop_header
      %s17 = sphi 0, %s21
      %p18 = scmp.ge.s32.totalorder %s17, 4
      %s27 = sphi 0, %s29
      %s30 = sphi 0, %s27
      %s31 = sphi 0, %s30
      %s47 = sphi 0, %s31
      %s51 = sphi 0, %s51
      %s53 = sphi 0, %s51
      %s54 = sphi 0, %s53
      %s68 = sphi 0, %s54
      %s72 = sphi 0, %s72
      %s74 = sphi 0, %s72
      %s75 = sphi 0, %s74
      %s89 = sphi 0, %s75
      %s93 = sphi 0, %s93
      %s95 = sphi 0, %s93
      %s96 = sphi 0, %s95
      %s110 = sphi 0, %s96
      %s114 = sphi 0, %s114
      %s116 = sphi 0, %s114
      %s117 = sphi 0, %s116
      %s131 = sphi 0, %s117
      %s137 = sphi 0, %s139
      %s140 = sphi 0, %s137
      %s141 = sphi 0, %s140
      %s157 = sphi 0, %s141
    $region4: #{tpu_custom_call.1} parent=1 // loop_header_branch
      %20 = sbr.rel (%p18) target = $region8
    $region5: #{tpu_custom_call.1} parent=1 // loop_body
      %s22 = ssub.s32 %s17, 1
      %s23 = ssub.s32 %s17, 2
      %s24 = sadd.s32 %s17, 1
      %s25 = ssub.s32 %s17, %s24
      %p26 = scmp.eq.s32.totalorder %s25, 0
      %s28 = sadd.s32 %s27, 1
      %s29 = scalar_select %p26, %s27, %s28
      %p32 = pneg %p26
      %p33 = scmp.eq.s32.totalorder %s17, 1
      %p34 = por %p32, %p33
      %p35 = scmp.ne.s32.totalorder %s27, %s30
      %p36 = scmp.eq.s32.totalorder %s17, 0
      %p37 = por %p35, %p36
      %p38 = scmp.ne.s32.totalorder %s27, %s30
      %p39 = scmp.eq.s32.totalorder %s22, 1
      %p40 = por %p38, %p39
      %p41 = scmp.ne.s32.totalorder %s30, %s31
      %p42 = scmp.eq.s32.totalorder %s22, 0
      %p43 = por %p41, %p42
      %p44 = scmp.ne.s32.totalorder %s30, %s31
      %p45 = scmp.eq.s32.totalorder %s23, 1
      %p46 = por %p44, %p45
      %p48 = scmp.ne.s32.totalorder %s31, %s47
      %p49 = scmp.eq.s32.totalorder %s23, 0
      %p50 = por %p48, %p49
      %s52 = sadd.s32 %s51, 1
      %p55 = scmp.eq.s32.totalorder %s17, 1
      %p56 = scmp.ne.s32.totalorder %s51, %s53
      %p57 = scmp.eq.s32.totalorder %s17, 0
      %p58 = por %p56, %p57
      %p59 = scmp.ne.s32.totalorder %s51, %s53
      %p60 = scmp.eq.s32.totalorder %s22, 1
      %p61 = por %p59, %p60
      %p62 = scmp.ne.s32.totalorder %s53, %s54
      %p63 = scmp.eq.s32.totalorder %s22, 0
      %p64 = por %p62, %p63
      %p65 = scmp.ne.s32.totalorder %s53, %s54
      %p66 = scmp.eq.s32.totalorder %s23, 1
      %p67 = por %p65, %p66
      %p69 = scmp.ne.s32.totalorder %s54, %s68
      %p70 = scmp.eq.s32.totalorder %s23, 0
      %p71 = por %p69, %p70
      %s73 = sadd.s32 %s72, 1
      %p76 = scmp.eq.s32.totalorder %s17, 1
      %p77 = scmp.ne.s32.totalorder %s72, %s74
      %p78 = scmp.eq.s32.totalorder %s17, 0
      %p79 = por %p77, %p78
      %p80 = scmp.ne.s32.totalorder %s72, %s74
      %p81 = scmp.eq.s32.totalorder %s22, 1
      %p82 = por %p80, %p81
      %p83 = scmp.ne.s32.totalorder %s74, %s75
      %p84 = scmp.eq.s32.totalorder %s22, 0
      %p85 = por %p83, %p84
      %p86 = scmp.ne.s32.totalorder %s74, %s75
      %p87 = scmp.eq.s32.totalorder %s23, 1
      %p88 = por %p86, %p87
      %p90 = scmp.ne.s32.totalorder %s75, %s89
      %p91 = scmp.eq.s32.totalorder %s23, 0
      %p92 = por %p90, %p91
      %s94 = sadd.s32 %s93, 1
      %p97 = scmp.eq.s32.totalorder %s17, 1
      %p98 = scmp.ne.s32.totalorder %s93, %s95
      %p99 = scmp.eq.s32.totalorder %s17, 0
      %p100 = por %p98, %p99
      %p101 = scmp.ne.s32.totalorder %s93, %s95
      %p102 = scmp.eq.s32.totalorder %s22, 1
      %p103 = por %p101, %p102
      %p104 = scmp.ne.s32.totalorder %s95, %s96
      %p105 = scmp.eq.s32.totalorder %s22, 0
      %p106 = por %p104, %p105
      %p107 = scmp.ne.s32.totalorder %s95, %s96
      %p108 = scmp.eq.s32.totalorder %s23, 1
      %p109 = por %p107, %p108
      %p111 = scmp.ne.s32.totalorder %s96, %s110
      %p112 = scmp.eq.s32.totalorder %s23, 0
      %p113 = por %p111, %p112
      %s115 = sadd.s32 %s114, 1
      %p118 = scmp.eq.s32.totalorder %s17, 1
      %p119 = scmp.ne.s32.totalorder %s114, %s116
      %p120 = scmp.eq.s32.totalorder %s17, 0
      %p121 = por %p119, %p120
      %p122 = scmp.ne.s32.totalorder %s114, %s116
      %p123 = scmp.eq.s32.totalorder %s22, 1
      %p124 = por %p122, %p123
      %p125 = scmp.ne.s32.totalorder %s116, %s117
      %p126 = scmp.eq.s32.totalorder %s22, 0
      %p127 = por %p125, %p126
      %p128 = scmp.ne.s32.totalorder %s116, %s117
      %p129 = scmp.eq.s32.totalorder %s23, 1
      %p130 = por %p128, %p129
      %p132 = scmp.ne.s32.totalorder %s117, %s131
      %p133 = scmp.eq.s32.totalorder %s23, 0
      %p134 = por %p132, %p133
      %s135 = ssub.s32 %s17, %s24
      %p136 = scmp.eq.s32.totalorder %s135, 0
      %s138 = sadd.s32 %s137, 1
      %s139 = scalar_select %p136, %s137, %s138
      %p142 = pneg %p136
      %p143 = scmp.eq.s32.totalorder %s17, 1
      %p144 = por %p142, %p143
      %p145 = scmp.ne.s32.totalorder %s137, %s140
      %p146 = scmp.eq.s32.totalorder %s17, 0
      %p147 = por %p145, %p146
      %p148 = scmp.ne.s32.totalorder %s137, %s140
      %p149 = scmp.eq.s32.totalorder %s22, 1
      %p150 = por %p148, %p149
      %p151 = scmp.ne.s32.totalorder %s140, %s141
      %p152 = scmp.eq.s32.totalorder %s22, 0
      %p153 = por %p151, %p152
      %p154 = scmp.ne.s32.totalorder %s140, %s141
      %p155 = scmp.eq.s32.totalorder %s23, 1
      %p156 = por %p154, %p155
      %p158 = scmp.ne.s32.totalorder %s141, %s157
      %p159 = scmp.eq.s32.totalorder %s23, 0
      %p160 = por %p158, %p159
      %p161 = scmp.le.s32.totalorder 1, %s17
      %p162 = scmp.lt.s32.totalorder %s17, 3
      %p163 = pnand %p161, %p162
      %p164 = pneg %p163
      // Predicated region
      $region9: #{tpu_custom_call.1} parent=5 // pred_check
        _
      $region10: #{tpu_custom_call.1} parent=5 // pred_check_branch
        %166 = sbr.rel (%p163) target = $region12
      $region11: #{tpu_custom_call.1} parent=5 // pred_region
        %s167 = ssub.s32 %s17, 1
        // Predicated region
        $region13: #{tpu_custom_call.1} parent=11 // pred_check
          %p168 = pneg %p64
        $region14: #{tpu_custom_call.1} parent=11 // pred_check_branch
          %170 = sbr.rel (%p168) target = $region16
        $region15: #{tpu_custom_call.1} parent=11 // pred_region
          _
        $region16: #{tpu_custom_call.1} parent=11 // pred_fallthru
          _
        // Predicated region
        $region17: #{tpu_custom_call.1} parent=11 // pred_check
          %p171 = pneg %p85
        $region18: #{tpu_custom_call.1} parent=11 // pred_check_branch
          %173 = sbr.rel (%p171) target = $region20
        $region19: #{tpu_custom_call.1} parent=11 // pred_region
          _
        $region20: #{tpu_custom_call.1} parent=11 // pred_fallthru
          _
        // Predicated region
        $region21: #{tpu_custom_call.1} parent=11 // pred_check
          %p174 = pneg %p106
        $region22: #{tpu_custom_call.1} parent=11 // pred_check_branch
          %176 = sbr.rel (%p174) target = $region24
        $region23: #{tpu_custom_call.1} parent=11 // pred_region
          _
        $region24: #{tpu_custom_call.1} parent=11 // pred_fallthru
          _
        // Predicated region
        $region25: #{tpu_custom_call.1} parent=11 // pred_check
          %p177 = pneg %p127
        $region26: #{tpu_custom_call.1} parent=11 // pred_check_branch
          %179 = sbr.rel (%p177) target = $region28
        $region27: #{tpu_custom_call.1} parent=11 // pred_region
          _
        $region28: #{tpu_custom_call.1} parent=11 // pred_fallthru
          _
      $region12: #{tpu_custom_call.1} parent=5 // pred_fallthru
        _
      %p180 = scmp.lt.s32.totalorder %s17, 2
      // Predicated region
      $region29: #{tpu_custom_call.1} parent=5 // pred_check
        %p181 = pneg %p180
      $region30: #{tpu_custom_call.1} parent=5 // pred_check_branch
        %183 = sbr.rel (%p181) target = $region32
      $region31: #{tpu_custom_call.1} parent=5 // pred_region
        // Predicated region
        $region33: #{tpu_custom_call.1} parent=31 // pred_check
          %p184 = pneg %p37
        $region34: #{tpu_custom_call.1} parent=31 // pred_check_branch
          %186 = sbr.rel (%p184) target = $region36
        $region35: #{tpu_custom_call.1} parent=31 // pred_region
          %s187 = sand.u32 %s27, 1
          %s188 = scalar_lea.sflag [#allocation3], %s187
          %s189 = sand.u32 %s27, 1
          %s190 = smul.addr %s189, 32
          %s191 = scalar_lea.vmem [#allocation2], %s190
          %s193 = ssub.s32 512, 512
          %194 = vsyncadd %s188, %s193
          %s195 = smul.addr %s17, 4
          %s196 = smul.addr %s195, 128
          %s197 = scalar_lea.hbm %s0, %s196
          %s198 = sshll.u32 %s191, 4
          %s199 = int_to_ptr.vmem [resolvable:$true] %s198
          %204 = dma.hbm_to_vmem [thread:$0]  %s197, 512, %s199, %s188, 256, 256, 16
        $region36: #{tpu_custom_call.1} parent=31 // pred_fallthru
          _
      $region32: #{tpu_custom_call.1} parent=5 // pred_fallthru
        _
      %p205 = scmp.le.s32.totalorder 1, %s17
      %p206 = scmp.lt.s32.totalorder %s17, 3
      %p207 = pnand %p205, %p206
      %p208 = pneg %p207
      // Predicated region
      $region37: #{tpu_custom_call.1} parent=5 // pred_check
        _
      $region38: #{tpu_custom_call.1} parent=5 // pred_check_branch
        %210 = sbr.rel (%p207) target = $region40
      $region39: #{tpu_custom_call.1} parent=5 // pred_region
        %s211 = ssub.s32 %s17, 1
        %s212 = sand.u32 %s30, 1
        %s213 = scalar_lea.sflag [#allocation3], %s212
        %s214 = sand.u32 %s30, 1
        %s215 = smul.addr %s214, 32
        %s216 = scalar_lea.vmem [#allocation2], %s215
        // Predicated region
        $region41: #{tpu_custom_call.1} parent=39 // pred_check
          %p217 = pneg %p43
        $region42: #{tpu_custom_call.1} parent=39 // pred_check_branch
          %219 = sbr.rel (%p217) target = $region44
        $region43: #{tpu_custom_call.1} parent=39 // pred_region
          %220 = dma.done %s213, 512
        $region44: #{tpu_custom_call.1} parent=39 // pred_fallthru
          _
        %s221 = sand.u32 %s30, 1
        %s222 = scalar_lea.sflag [#allocation3], %s221
        %s223 = sand.u32 %s30, 1
        %s224 = smul.addr %s223, 32
        %s225 = scalar_lea.vmem [#allocation2], %s224
        %p226 = pneg %p43
        %p227 = pneg %p40
        %p228 = pneg %p64
        %p229 = pneg %p61
        %p230 = pneg %p85
        %p231 = pneg %p82
        %p232 = pneg %p106
        %p233 = pneg %p103
        %p234 = pneg %p127
        %p235 = pneg %p124
        %p236 = pneg %p153
        %p237 = pneg %p150
        %s238 = sand.u32 %s140, 1
        %s239 = scalar_lea.sflag [#allocation4], %s238
        %s240 = sand.u32 %s140, 1
        %s241 = smul.addr %s240, 32
        %s242 = scalar_lea.vmem [#allocation5], %s241
        %v243 = vld [vmem:[%s216] sm:$0xff]
        %v244 = vld [vmem:[%s216 + $0x8] sm:$0xff]
        %v245 = vld [vmem:[%s216 + $0x10] sm:$0xff]
        %v246 = vld [vmem:[%s216 + $0x18] sm:$0xff]
        %v247 = vadd.f32 %v243, %v244
        %248 = vadd.xlane.f32.xlu0 %v247
        %v249 = vpop.xlane.xlu0 %248
        %v250 = vadd.f32 %v245, %v246
        %251 = vadd.xlane.f32.xlu0 %v250
        %v252 = vpop.xlane.xlu0 %251
        %v253 = vmul.f32 %v249, 0.00390625
        %v254 = vmul.f32 %v252, 0.00390625
        %v255 = vld [vmem:[%s1] sm:$0xff]
        %v256 = vld [vmem:[%s2] sm:$0xff]
        %vm257 = vcmask 130048
        %v259 = vsel %vm257, %v255, 0
        %261 = vmatprep.subr.mxu0 0.0
        %262 = vmatpush1.msra.mxu0 %v253
        %263 = vmatprep.subr.mxu0 0.0
        %264 = vmatpush1.msra.mxu0 %v254
        %265 = vmatprep.subr.mxu0 0.0
        %266 = vmatpush1.msra.mxu0 0.0
        %267 = vmatprep.subr.mxu0 0.0
        %268 = vmatpush1.msra.mxu0 0.0
        %269 = vmatprep.subr.mxu0 0.0
        %270 = vmatpush1.msra.mxu0 0.0
        %271 = vmatprep.subr.mxu0 0.0
        %272 = vmatpush1.msra.mxu0 0.0
        %273 = vmatprep.subr.mxu0 0.0
        %274 = vmatpush1.msra.mxu0 0.0
        %275 = vmatprep.subr.mxu0 0.0
        %276 = vmatpush1.msra.mxu0 0.0
        %277 = vmatprep.subr.mxu0 0.0
        %278 = vmatpush1.msra.mxu0 0.0
        %279 = vmatprep.subr.mxu0 0.0
        %280 = vmatpush1.msra.mxu0 0.0
        %281 = vmatprep.subr.mxu0 0.0
        %282 = vmatpush1.msra.mxu0 0.0
        %283 = vmatprep.subr.mxu0 0.0
        %284 = vmatpush1.msra.mxu0 0.0
        %285 = vmatprep.subr.mxu0 0.0
        %286 = vmatpush1.msra.mxu0 0.0
        %287 = vmatprep.subr.mxu0 0.0
        %288 = vmatpush1.msra.mxu0 0.0
        %289 = vmatprep.subr.mxu0 0.0
        %290 = vmatpush1.msra.mxu0 0.0
        %291 = vmatprep.subr.mxu0 0.0
        %292 = vmatpush1.msra.mxu0 0.0
        %293 = vmatprep.subr.mxu0 0.0
        %294 = vmatpush1.msra.mxu0 0.0
        %295 = vmatprep.subr.mxu0 0.0
        %296 = vmatpush1.msra.mxu0 0.0
        %297 = vmatprep.subr.mxu0 0.0
        %298 = vmatpush1.msra.mxu0 0.0
        %299 = vmatprep.subr.mxu0 0.0
        %300 = vmatpush1.msra.mxu0 0.0
        %301 = vmatprep.subr.mxu0 0.0
        %302 = vmatpush1.msra.mxu0 0.0
        %303 = vmatprep.subr.mxu0 0.0
        %304 = vmatpush1.msra.mxu0 0.0
        %305 = vmatprep.subr.mxu0 0.0
        %306 = vmatpush1.msra.mxu0 0.0
        %307 = vmatprep.subr.mxu0 0.0
        %308 = vmatpush1.msra.mxu0 0.0
        %309 = vmatprep.subr.mxu0 0.0
        %310 = vmatpush1.msra.mxu0 0.0
        %311 = vmatprep.subr.mxu0 0.0
        %312 = vmatpush1.msra.mxu0 0.0
        %313 = vmatprep.subr.mxu0 0.0
        %314 = vmatpush1.msra.mxu0 0.0
        %315 = vmatprep.subr.mxu0 0.0
        %316 = vmatpush1.msra.mxu0 0.0
        %317 = vmatprep.subr.mxu0 0.0
        %318 = vmatpush1.msra.mxu0 0.0
        %319 = vmatprep.subr.mxu0 0.0
        %320 = vmatpush1.msra.mxu0 0.0
        %321 = vmatprep.subr.mxu0 0.0
        %322 = vmatpush1.msra.mxu0 0.0
        %323 = vmatprep.subr.mxu0 0.0
        %324 = vmatpush1.msra.mxu0 0.0
        %325 = vmatprep.mubr.f32.mxu0 0.0
        %326 = vmatmul.mubr.f32.gmra.mrb[0].mxu0 %v259
        %v327 = vpop.f32.mrb[0].mxu0
        %v328 = vadd.f32 %v256, %v327
        %v329 = vpop.f32.mrb[0].mxu0
        %330 = vdwg.mxu0
        %v331 = vmax.f32 %v328, 0.0
        %v332 = vld [vmem:[%s3] sm:$0xff]
        %v333 = vld [vmem:[%s3 + $0x8] sm:$0xff]
        %v334 = vld [vmem:[%s4] sm:$0xff]
        %v335 = vld [vmem:[%s4 + $0x8] sm:$0xff]
        %vm336 = vcmask 64512
        %v338 = vsel %vm336, %v332, 0
        %v341 = vsel %vm336, %v333, 0
        %343 = vmatprep.subr.mxu0 0.0
        %344 = vmatpush1.msra.mxu0 %v331
        %345 = vmatprep.subr.mxu0 0.0
        %346 = vmatpush1.msra.mxu0 0.0
        %347 = vmatprep.subr.mxu0 0.0
        %348 = vmatpush1.msra.mxu0 0.0
        %349 = vmatprep.subr.mxu0 0.0
        %350 = vmatpush1.msra.mxu0 0.0
        %351 = vmatprep.subr.mxu0 0.0
        %352 = vmatpush1.msra.mxu0 0.0
        %353 = vmatprep.subr.mxu0 0.0
        %354 = vmatpush1.msra.mxu0 0.0
        %355 = vmatprep.subr.mxu0 0.0
        %356 = vmatpush1.msra.mxu0 0.0
        %357 = vmatprep.subr.mxu0 0.0
        %358 = vmatpush1.msra.mxu0 0.0
        %359 = vmatprep.subr.mxu0 0.0
        %360 = vmatpush1.msra.mxu0 0.0
        %361 = vmatprep.subr.mxu0 0.0
        %362 = vmatpush1.msra.mxu0 0.0
        %363 = vmatprep.subr.mxu0 0.0
        %364 = vmatpush1.msra.mxu0 0.0
        %365 = vmatprep.subr.mxu0 0.0
        %366 = vmatpush1.msra.mxu0 0.0
        %367 = vmatprep.subr.mxu0 0.0
        %368 = vmatpush1.msra.mxu0 0.0
        %369 = vmatprep.subr.mxu0 0.0
        %370 = vmatpush1.msra.mxu0 0.0
        %371 = vmatprep.subr.mxu0 0.0
        %372 = vmatpush1.msra.mxu0 0.0
        %373 = vmatprep.subr.mxu0 0.0
        %374 = vmatpush1.msra.mxu0 0.0
        %375 = vmatprep.subr.mxu0 0.0
        %376 = vmatpush1.msra.mxu0 0.0
        %377 = vmatprep.subr.mxu0 0.0
        %378 = vmatpush1.msra.mxu0 0.0
        %379 = vmatprep.subr.mxu0 0.0
        %380 = vmatpush1.msra.mxu0 0.0
        %381 = vmatprep.subr.mxu0 0.0
        %382 = vmatpush1.msra.mxu0 0.0
        %383 = vmatprep.subr.mxu0 0.0
        %384 = vmatpush1.msra.mxu0 0.0
        %385 = vmatprep.subr.mxu0 0.0
        %386 = vmatpush1.msra.mxu0 0.0
        %387 = vmatprep.subr.mxu0 0.0
        %388 = vmatpush1.msra.mxu0 0.0
        %389 = vmatprep.subr.mxu0 0.0
        %390 = vmatpush1.msra.mxu0 0.0
        %391 = vmatprep.subr.mxu0 0.0
        %392 = vmatpush1.msra.mxu0 0.0
        %393 = vmatprep.subr.mxu0 0.0
        %394 = vmatpush1.msra.mxu0 0.0
        %395 = vmatprep.subr.mxu0 0.0
        %396 = vmatpush1.msra.mxu0 0.0
        %397 = vmatprep.subr.mxu0 0.0
        %398 = vmatpush1.msra.mxu0 0.0
        %399 = vmatprep.subr.mxu0 0.0
        %400 = vmatpush1.msra.mxu0 0.0
        %401 = vmatprep.subr.mxu0 0.0
        %402 = vmatpush1.msra.mxu0 0.0
        %403 = vmatprep.subr.mxu0 0.0
        %404 = vmatpush1.msra.mxu0 0.0
        %405 = vmatprep.subr.mxu0 0.0
        %406 = vmatpush1.msra.mxu0 0.0
        %407 = vmatprep.mubr.f32.mxu0 0.0
        %408 = vmatmul.mubr.f32.gmra.mrb[0].mxu0 %v338
        %v409 = vpop.f32.mrb[0].mxu0
        %v410 = vadd.f32 %v334, %v409
        %v411 = vpop.f32.mrb[0].mxu0
        %412 = vmatprep.mubr.f32.mxu0 0.0
        %413 = vmatmul.mubr.f32.gmra.mrb[0].mxu0 %v341
        %v414 = vpop.f32.mrb[0].mxu0
        %v415 = vadd.f32 %v335, %v414
        %v416 = vpop.f32.mrb[0].mxu0
        %417 = vdwg.mxu0
        %v418 = vrcp.pop 6.0
        %v419 = vmul.f32 %v410, %v418
        %v420 = vmul.f32 %v415, %v418
        %v421 = vadd.f32 %v419, 0.5
        %v422 = vadd.f32 %v420, 0.5
        %v423 = vmax.f32 %v421, 0.0
        %v424 = vmax.f32 %v422, 0.0
        %v425 = vmin.f32 %v423, 1.0
        %v426 = vmin.f32 %v424, 1.0
        %428 = vset.pattern.permute.xlu0 0
        %429 = vperm.xlu0 %428, %v425
        %v430 = vpop.permute.xlu0 %429
        %433 = vset.pattern.permute.xlu0 0
        %434 = vperm.xlu0 %433, %v426
        %v435 = vpop.permute.xlu0 %434
        %v437 = vmul.f32 %v243, %v430
        %v438 = vmul.f32 %v244, %v430
        %v439 = vmul.f32 %v245, %v435
        %v440 = vmul.f32 %v246, %v435
        %441 = vst [vmem:[%s242] sm:$0xff] %v437
        %442 = vst [vmem:[%s242 + $0x8] sm:$0xff] %v438
        %443 = vst [vmem:[%s242 + $0x10] sm:$0xff] %v439
        %444 = vst [vmem:[%s242 + $0x18] sm:$0xff] %v440
        %s445 = sand.u32 %s140, 1
        %s446 = scalar_lea.sflag [#allocation4], %s445
        %s447 = sand.u32 %s140, 1
        %s448 = smul.addr %s447, 32
        %s449 = scalar_lea.vmem [#allocation5], %s448
        // Predicated region
        $region45: #{tpu_custom_call.1} parent=39 // pred_check
          %p450 = pneg %p150
        $region46: #{tpu_custom_call.1} parent=39 // pred_check_branch
          %452 = sbr.rel (%p450) target = $region48
        $region47: #{tpu_custom_call.1} parent=39 // pred_region
          %s454 = ssub.s32 512, 512
          %455 = vsyncadd %s446, %s454
          %s456 = smul.addr %s22, 4
          %s457 = smul.addr %s456, 128
          %s458 = scalar_lea.hbm %s5, %s457
          %s459 = sshll.u32 %s449, 4
          %s460 = int_to_ptr.vmem [resolvable:$true] %s459
          %465 = dma.vmem_to_hbm [thread:$0]  %s460, 512, %s458, %s446, 256, 256, 16
        $region48: #{tpu_custom_call.1} parent=39 // pred_fallthru
          _
      $region40: #{tpu_custom_call.1} parent=5 // pred_fallthru
        _
      %p466 = scmp.le.s32.totalorder 2, %s17
      // Predicated region
      $region49: #{tpu_custom_call.1} parent=5 // pred_check
        %p467 = pneg %p466
      $region50: #{tpu_custom_call.1} parent=5 // pred_check_branch
        %469 = sbr.rel (%p467) target = $region52
      $region51: #{tpu_custom_call.1} parent=5 // pred_region
        %s470 = ssub.s32 %s17, 2
        // Predicated region
        $region53: #{tpu_custom_call.1} parent=51 // pred_check
          %p471 = pneg %p156
        $region54: #{tpu_custom_call.1} parent=51 // pred_check_branch
          %473 = sbr.rel (%p471) target = $region56
        $region55: #{tpu_custom_call.1} parent=51 // pred_region
          %s474 = sand.u32 %s141, 1
          %s475 = scalar_lea.sflag [#allocation4], %s474
          %s476 = sand.u32 %s141, 1
          %s477 = smul.addr %s476, 32
          %s478 = scalar_lea.vmem [#allocation5], %s477
          %479 = dma.done %s475, 512
        $region56: #{tpu_custom_call.1} parent=51 // pred_fallthru
          _
      $region52: #{tpu_custom_call.1} parent=5 // pred_fallthru
        _
    $region6: #{tpu_custom_call.1} parent=1 // loop_footer
      %s21 = sadd.s32 1, %s17
    $region7: #{tpu_custom_call.1} parent=1 // loop_footer_branch
      %16 = sbr.rel target = $region3
    $region8: #{tpu_custom_call.1} parent=1 // loop_exit
      _
    %480 = vsyncpa [#allocation3], 1
    %s481 = scalar_lea.sflag [#allocation3], 1
    %482 = vsyncpa %s481, 1
    %483 = vsyncpa [#allocation4], 1
    %s484 = scalar_lea.sflag [#allocation4], 1
    %485 = vsyncpa %s484, 1

</llo_original>
